<compile_context>
chip_gen: v5e
topology: v5e:2x2
jax: 0.10.0
libtpu: 0.0.40
codegen_flags: <defaults>
</compile_context>

<pallas_src>
import functools
import math

import jax
import jax.numpy as jnp
from jax import lax
from jax.experimental import pallas as pl
from jax.experimental.pallas import tpu as pltpu

EPS = 1e-5
KERNEL_SIZE = 9
DILATION = 2
PADDING = 8          # L_out = L + 2*8 - 2*(9-1) = L  (residual add stays shape-compatible)
LANE = 128           # lane quantum (halo-block width)


# --------------------------------------------------------------------------
# GELU (exact-erf via Abramowitz & Stegun 7.1.26; max abs err ~1.5e-7).
# The reciprocal goes to the EUP (approx) + one Newton step (VPU) so it stays
# off the expensive VPU divide path.
# --------------------------------------------------------------------------
def _erf_approx(x):
    a1 = 0.254829592
    a2 = -0.284496736
    a3 = 1.421413741
    a4 = -1.453152027
    a5 = 1.061405429
    p = 0.3275911
    ax = jnp.abs(x)
    d = 1.0 + p * ax
    t = pl.reciprocal(d, approx=True)       # EUP slot (cheap next to MXU/VPU work)
    t = t * (2.0 - d * t)                   # one Newton step -> ~f32-exact 1/d
    poly = ((((a5 * t + a4) * t + a3) * t + a2) * t + a1) * t
    y = 1.0 - poly * jnp.exp(-ax * ax)
    return jnp.where(x >= 0, y, -y)


def _gelu(x):
    return 0.5 * x * (1.0 + _erf_approx(x * 0.7071067811865476))


# --------------------------------------------------------------------------
# Fused kernel: dilated conv1d  ->  LayerNorm(channels)  [-> +residual] -> GELU
# One grid cell = (batch b, seq tile j); output tile is (C, T).
# --------------------------------------------------------------------------
def _fused_conv_ln_act_kernel(*refs, tiled, n_seq_tiles, has_mask, has_res):
    it = iter(refs)
    x_c_ref = next(it)                               # (C, T) center seq tile
    x_l_ref = next(it) if tiled else None            # (C, 128) block left of tile
    x_r_ref = next(it) if tiled else None            # (C, 128) block right of tile
    m_c_ref = m_l_ref = m_r_ref = None
    if has_mask:
        m_c_ref = next(it)                           # (1, T)
        if tiled:
            m_l_ref = next(it)                       # (1, 128)
            m_r_ref = next(it)                       # (1, 128)
    res_ref = next(it) if has_res else None          # (C, T) residual (unmasked x)
    w_ref = next(it)                                 # (K, C_out, C_in), model dtype
    g_ref = next(it)                                 # (C, 1) f32
    b_ref = next(it)                                 # (C, 1) f32
    o_ref = next(it)                                 # (C, T) output
    win_ref = next(it)                               # (C, T + 16) scratch window

    C, T = o_ref.shape

    xc = x_c_ref[...]
    if has_mask:
        xc = xc * m_c_ref[...]                       # (1,T) broadcast over channels

    if tiled:
        j = pl.program_id(1)
        xl = x_l_ref[...][:, LANE - PADDING:]        # last 8 cols of left neighbour block
        xr = x_r_ref[...][:, :PADDING]               # first 8 cols of right neighbour block
        if has_mask:
            xl = xl * m_l_ref[...][:, LANE - PADDING:]
            xr = xr * m_r_ref[...][:, :PADDING]
        left = jnp.where(j > 0, xl, jnp.zeros_like(xl))                 # zero pad at seq start
        right = jnp.where(j < n_seq_tiles - 1, xr, jnp.zeros_like(xr))  # zero pad at seq end
    else:
        left = jnp.zeros((C, PADDING), dtype=xc.dtype)
        right = jnp.zeros((C, PADDING), dtype=xc.dtype)

    # Stage the zero-padded / halo-extended conv window in VMEM (no HBM pad pass).
    win_ref[:, :PADDING] = left
    win_ref[:, PADDING:PADDING + T] = xc
    win_ref[:, PADDING + T:] = right

    # Dilated conv as 9 MXU matmuls; operands stay in model dtype, f32 accumulator.
    # TODO(synk): switch to an im2col (9*C, T) slab + single long-K matmul if the
    # 9 lane-unaligned slices ever show up as the binding slot in the bundle dump.
    # TODO(synk): for hidden < 128, fold batch into the matmul M dim for MXU utilization.
    acc = jnp.zeros((C, T), jnp.float32)
    for k in range(KERNEL_SIZE):                     # static unroll
        xs = win_ref[:, k * DILATION:k * DILATION + T]
        acc = acc + jnp.dot(w_ref[k], xs, preferred_element_type=jnp.float32)

    # Fused LayerNorm over the channel (sublane) axis, per sequence position.
    mean = jnp.mean(acc, axis=0, keepdims=True)
    cen = acc - mean
    var = jnp.mean(cen * cen, axis=0, keepdims=True)
    y = cen * lax.rsqrt(var + EPS) * g_ref[...] + b_ref[...]
    if has_res:
        y = y + res_ref[...].astype(jnp.float32)
    y = _gelu(y)
    o_ref[...] = y.astype(o_ref.dtype)


# --------------------------------------------------------------------------
# Seq-tile selection: largest lane-dense tile that divides L and keeps the
# double-buffered working set within a conservative VMEM budget (safe for the
# v7x 64 MiB physical / 32 MiB default-scoped VMEM; plenty of slack on v5e/v6e).
# --------------------------------------------------------------------------
def _pick_seq_tile(L, C, itemsize, n_big_blocks, w_bytes, cap=None,
                   budget=40 * 1024 * 1024):
    if L % 128 != 0:
        return L                         # full-L block (always legal)
    best, t = 128, 128
    while t <= L:
        if L % t == 0 and (cap is None or t <= cap):
            need = (n_big_blocks * 2 * C * t * itemsize   # double-buffered x / out / res tiles
                    + 6 * C * t * 4                       # window / acc / epilogue f32 temps
                    + 4 * C * LANE * itemsize             # halo blocks
                    + 2 * w_bytes)                        # (double-buffered) weights
            if need <= budget:
                best = t
        t *= 2
    return best


def _fused_conv_ln_act(x, weight, gamma, beta, *, residual=None, input_mask=None,
                       max_seq_tile=None):
    """gelu( LN_channels( dilated_conv1d(x [* mask]) ) [+ residual] ), NCL layout."""
    B, C, L = x.shape
    w_t = jnp.transpose(weight, (2, 0, 1)).astype(x.dtype)   # (K, C_out, C_in), model dtype
    g2d = gamma.reshape(C, 1).astype(jnp.float32)
    b2d = beta.reshape(C, 1).astype(jnp.float32)

    mask3 = None
    if input_mask is not None:
        m = jnp.asarray(input_mask, x.dtype)
        try:
            mask3 = jnp.broadcast_to(m, (B, 1, L))
        except (ValueError, TypeError):
            x = x * m          # rare per-channel mask: fall back to a wrapper multiply
            mask3 = None

    n_big = 2 + (1 if residual is not None else 0)
    w_bytes = KERNEL_SIZE * C * C * x.dtype.itemsize
    T = _pick_seq_tile(L, C, x.dtype.itemsize, n_big, w_bytes, cap=max_seq_tile)
    nT = L // T
    tiled = nT > 1

    x_tile_spec = pl.BlockSpec((None, C, T), lambda b, j: (b, 0, j))
    specs, ops = [x_tile_spec], [x]
    if tiled:
        r = T // LANE
        n_lane_blocks = L // LANE
        left_map = lambda b, j: (b, 0, jnp.maximum(j * r - 1, 0))
        right_map = lambda b, j: (b, 0, jnp.minimum((j + 1) * r, n_lane_blocks - 1))
        specs += [pl.BlockSpec((None, C, LANE), left_map),
                  pl.BlockSpec((None, C, LANE), right_map)]
        ops += [x, x]
    if mask3 is not None:
        specs.append(pl.BlockSpec((None, 1, T), lambda b, j: (b, 0, j)))
        ops.append(mask3)
        if tiled:
            specs += [pl.BlockSpec((None, 1, LANE), left_map),
                      pl.BlockSpec((None, 1, LANE), right_map)]
            ops += [mask3, mask3]
    if residual is not None:
        specs.append(pl.BlockSpec((None, C, T), lambda b, j: (b, 0, j)))
        ops.append(residual)
    specs += [pl.BlockSpec((KERNEL_SIZE, C, C), lambda b, j: (0, 0, 0)),
              pl.BlockSpec((C, 1), lambda b, j: (0, 0)),
              pl.BlockSpec((C, 1), lambda b, j: (0, 0))]
    ops += [w_t, g2d, b2d]

    n_elems = B * C * L
    cost = pl.CostEstimate(
        flops=2 * B * C * C * KERNEL_SIZE * L + 12 * n_elems,
        transcendentals=2 * n_elems,
        bytes_accessed=x.dtype.itemsize
        * (n_elems * (2 + (1 if residual is not None else 0)) + KERNEL_SIZE * C * C),
    )

    kernel = functools.partial(
        _fused_conv_ln_act_kernel,
        tiled=tiled, n_seq_tiles=nT,
        has_mask=mask3 is not None, has_res=residual is not None)

    return pl.pallas_call(
        kernel,
        out_shape=jax.ShapeDtypeStruct((B, C, L), x.dtype),
        grid=(B, nT),
        in_specs=specs,
        out_specs=x_tile_spec,
        scratch_shapes=[pltpu.VMEM((C, T + 2 * PADDING), x.dtype)],
        compiler_params=pltpu.CompilerParams(
            dimension_semantics=("parallel", "parallel"),
            vmem_limit_bytes=48 * 1024 * 1024,
        ),
        cost_estimate=cost,
    )(*ops)


# --------------------------------------------------------------------------
# Full ProteinResNetBlock forward (two fused conv+LN+GELU kernels total).
# --------------------------------------------------------------------------
def protein_resnet_block(x, conv1_w, gamma1, beta1, conv2_w, gamma2, beta2,
                         input_mask=None, max_seq_tile=None):
    """x: (batch, hidden_size, seq_len) -> (batch, hidden_size, seq_len)."""
    identity = x
    out = _fused_conv_ln_act(x, conv1_w, gamma1, beta1,
                             input_mask=input_mask, max_seq_tile=max_seq_tile)
    out = _fused_conv_ln_act(out, conv2_w, gamma2, beta2,
                             residual=identity, input_mask=input_mask,
                             max_seq_tile=max_seq_tile)
    return out


# --------------------------------------------------------------------------
# Pure-JAX reference (mirrors the PyTorch module exactly)
# --------------------------------------------------------------------------
def _reference_block(x, conv1_w, g1, b1, conv2_w, g2, b2, input_mask=None):
    def conv(inp, w):
        if input_mask is not None:
            inp = inp * input_mask
        return lax.conv_general_dilated(
            inp, w, window_strides=(1,), padding=[(PADDING, PADDING)],
            rhs_dilation=(DILATION,), dimension_numbers=("NCH", "OIH", "NCH"))

    def ln(inp, g, b):
        y = jnp.transpose(inp, (0, 2, 1)).astype(jnp.float32)
        mean = jnp.mean(y, axis=-1, keepdims=True)
        var = jnp.mean((y - mean) ** 2, axis=-1, keepdims=True)
        y = (y - mean) / jnp.sqrt(var + EPS) * g + b
        return jnp.transpose(y, (0, 2, 1))

    gelu = lambda v: jax.nn.gelu(v, approximate=False)
    out = gelu(ln(conv(x, conv1_w), g1, b1))
    out = ln(conv(out, conv2_w), g2, b2) + x
    return gelu(out).astype(x.dtype)


if __name__ == "__main__":
    root = jax.random.PRNGKey(0)
    k_small, k_big = jax.random.split(root)

    def make_conv_weights(key, hidden):
        kw1, kw2 = jax.random.split(key)
        bound = 1.0 / math.sqrt(hidden * KERNEL_SIZE)
        w1 = jax.random.uniform(kw1, (hidden, hidden, KERNEL_SIZE),
                                jnp.float32, -bound, bound)
        w2 = jax.random.uniform(kw2, (hidden, hidden, KERNEL_SIZE),
                                jnp.float32, -bound, bound)
        return w1, w2

    # ---- Test 1: module demo config (batch=2, hidden=32, seq=8), no mask ----
    batch, hidden, seq = 2, 32, 8
    kx, kw = jax.random.split(k_small)
    x = jax.random.normal(kx, (batch, hidden, seq), jnp.float32)
    w1, w2 = make_conv_weights(kw, hidden)
    g1 = jnp.ones((hidden,), jnp.float32); b1 = jnp.zeros((hidden,), jnp.float32)
    g2 = jnp.ones((hidden,), jnp.float32); b2 = jnp.zeros((hidden,), jnp.float32)

    out = jax.block_until_ready(protein_resnet_block(x, w1, g1, b1, w2, g2, b2))
    ref = _reference_block(x, w1, g1, b1, w2, g2, b2)
    assert out.shape == (batch, hidden, seq)
    err = float(jnp.max(jnp.abs(out - ref)))
    assert jnp.allclose(out, ref, atol=1e-4, rtol=1e-4), \
        f"small-config mismatch, max err {err}"

    # ---- Test 2: tiled seq path with halos + input mask (hidden=128, seq=512) ----
    batch, hidden, seq = 2, 128, 512
    kx, kw, kg, kb, km = jax.random.split(k_big, 5)
    x = jax.random.normal(kx, (batch, hidden, seq), jnp.float32)
    w1, w2 = make_conv_weights(kw, hidden)
    g1 = 1.0 + 0.1 * jax.random.normal(kg, (hidden,), jnp.float32)
    b1 = 0.1 * jax.random.normal(kb, (hidden,), jnp.float32)
    g2 = jnp.ones((hidden,), jnp.float32); b2 = jnp.zeros((hidden,), jnp.float32)
    mask = (jax.random.uniform(km, (batch, 1, seq)) > 0.1).astype(jnp.float32)

    out = jax.block_until_ready(
        protein_resnet_block(x, w1, g1, b1, w2, g2, b2,
                             input_mask=mask, max_seq_tile=128))
    ref = _reference_block(x, w1, g1, b1, w2, g2, b2, input_mask=mask)
    assert out.shape == (batch, hidden, seq)
    err = float(jnp.max(jnp.abs(out - ref)))
    assert jnp.allclose(out, ref, atol=2e-4, rtol=2e-4), \
        f"tiled-config mismatch, max err {err}"

    print("KERNEL_OK")
</pallas_src>

<mosaic_0001>
module attributes {stable_mosaic.version = 11 : i64} {
  func.func @_fused_conv_ln_act_kernel(%arg0: i32, %arg1: i32, %arg2: memref<1x32x8xf32, #tpu.memory_space<vmem>>, %arg3: memref<9x32x32xf32, #tpu.memory_space<vmem>>, %arg4: memref<32x1xf32, #tpu.memory_space<vmem>>, %arg5: memref<32x1xf32, #tpu.memory_space<vmem>>, %arg6: memref<1x32x8xf32, #tpu.memory_space<vmem>>, %arg7: memref<32x24xf32, #tpu.memory_space<vmem>>) attributes {dimension_semantics = [#tpu.dimension_semantics<parallel>, #tpu.dimension_semantics<parallel>], iteration_bounds = array<i64: 2, 1>, scalar_prefetch = 0 : i64, scratch_operands = 1 : i64, tpu.core_type = #tpu.core_type<tc>, window_params = [{transform_indices = @transform_0, window_bounds = array<i64: 1, 32, 8>}, {pipeline_mode = #tpu.pipeline_mode<synchronous>, transform_indices = @transform_1, window_bounds = array<i64: 9, 32, 32>}, {pipeline_mode = #tpu.pipeline_mode<synchronous>, transform_indices = @transform_2, window_bounds = array<i64: 32, 1>}, {pipeline_mode = #tpu.pipeline_mode<synchronous>, transform_indices = @transform_3, window_bounds = array<i64: 32, 1>}, {transform_indices = @transform_4, window_bounds = array<i64: 1, 32, 8>}]} {
    %c0 = arith.constant 0 : index
    %c0_0 = arith.constant 0 : index
    %c0_1 = arith.constant 0 : index
    %0 = vector.load %arg2[%c0, %c0_0, %c0_1] : memref<1x32x8xf32, #tpu.memory_space<vmem>>, vector<1x32x8xf32>
    %1 = vector.shape_cast %0 : vector<1x32x8xf32> to vector<32x8xf32>
    %cst = arith.constant 0.000000e+00 : f32
    %2 = vector.broadcast %cst : f32 to vector<32x8xf32>
    %cst_2 = arith.constant 0.000000e+00 : f32
    %3 = vector.broadcast %cst_2 : f32 to vector<32x8xf32>
    %c0_3 = arith.constant 0 : index
    %c0_4 = arith.constant 0 : index
    %4 = vector.load %arg7[%c0_3, %c0_4] : memref<32x24xf32, #tpu.memory_space<vmem>>, vector<32x8xf32>
    tpu.vector_store %arg7[%c0_3, %c0_4], %2 {strides = array<i32>} : memref<32x24xf32, #tpu.memory_space<vmem>>, vector<32x8xf32>,
    %c0_5 = arith.constant 0 : index
    %c8 = arith.constant 8 : index
    %5 = vector.load %arg7[%c0_5, %c8] : memref<32x24xf32, #tpu.memory_space<vmem>>, vector<32x8xf32>
    tpu.vector_store %arg7[%c0_5, %c8], %1 {strides = array<i32>} : memref<32x24xf32, #tpu.memory_space<vmem>>, vector<32x8xf32>,
    %c0_6 = arith.constant 0 : index
    %c16 = arith.constant 16 : index
    %6 = vector.load %arg7[%c0_6, %c16] : memref<32x24xf32, #tpu.memory_space<vmem>>, vector<32x8xf32>
    tpu.vector_store %arg7[%c0_6, %c16], %3 {strides = array<i32>} : memref<32x24xf32, #tpu.memory_space<vmem>>, vector<32x8xf32>,
    %cst_7 = arith.constant 0.000000e+00 : f32
    %7 = vector.broadcast %cst_7 : f32 to vector<32x8xf32>
    %c0_8 = arith.constant 0 : index
    %c0_9 = arith.constant 0 : index
    %8 = vector.load %arg7[%c0_8, %c0_9] : memref<32x24xf32, #tpu.memory_space<vmem>>, vector<32x8xf32>
    %c0_10 = arith.constant 0 : index
    %c0_11 = arith.constant 0 : index
    %c0_12 = arith.constant 0 : index
    %9 = vector.load %arg3[%c0_10, %c0_11, %c0_12] : memref<9x32x32xf32, #tpu.memory_space<vmem>>, vector<1x32x32xf32>
    %10 = vector.shape_cast %9 : vector<1x32x32xf32> to vector<32x32xf32>
    %cst_13 = arith.constant dense<0.000000e+00> : vector<32x8xf32>
    %11 = tpu.matmul %10, %8, %cst_13 {dimension_numbers = #tpu.dot_dimension_numbers<[1], [0], [0], [1], [0, 0, 1, 1], [], []>} : vector<32x32xf32>, vector<32x8xf32>, vector<32x8xf32> -> vector<32x8xf32>
    %12 = arith.addf %7, %11 : vector<32x8xf32>
    %c0_14 = arith.constant 0 : index
    %c2 = arith.constant 2 : index
    %13 = vector.load %arg7[%c0_14, %c2] : memref<32x24xf32, #tpu.memory_space<vmem>>, vector<32x8xf32>
    %c1 = arith.constant 1 : index
    %c0_15 = arith.constant 0 : index
    %c0_16 = arith.constant 0 : index
    %14 = vector.load %arg3[%c1, %c0_15, %c0_16] : memref<9x32x32xf32, #tpu.memory_space<vmem>>, vector<1x32x32xf32>
    %15 = vector.shape_cast %14 : vector<1x32x32xf32> to vector<32x32xf32>
    %cst_17 = arith.constant dense<0.000000e+00> : vector<32x8xf32>
    %16 = tpu.matmul %15, %13, %cst_17 {dimension_numbers = #tpu.dot_dimension_numbers<[1], [0], [0], [1], [0, 0, 1, 1], [], []>} : vector<32x32xf32>, vector<32x8xf32>, vector<32x8xf32> -> vector<32x8xf32>
    %17 = arith.addf %12, %16 : vector<32x8xf32>
    %c0_18 = arith.constant 0 : index
    %c4 = arith.constant 4 : index
    %18 = vector.load %arg7[%c0_18, %c4] : memref<32x24xf32, #tpu.memory_space<vmem>>, vector<32x8xf32>
    %c2_19 = arith.constant 2 : index
    %c0_20 = arith.constant 0 : index
    %c0_21 = arith.constant 0 : index
    %19 = vector.load %arg3[%c2_19, %c0_20, %c0_21] : memref<9x32x32xf32, #tpu.memory_space<vmem>>, vector<1x32x32xf32>
    %20 = vector.shape_cast %19 : vector<1x32x32xf32> to vector<32x32xf32>
    %cst_22 = arith.constant dense<0.000000e+00> : vector<32x8xf32>
    %21 = tpu.matmul %20, %18, %cst_22 {dimension_numbers = #tpu.dot_dimension_numbers<[1], [0], [0], [1], [0, 0, 1, 1], [], []>} : vector<32x32xf32>, vector<32x8xf32>, vector<32x8xf32> -> vector<32x8xf32>
    %22 = arith.addf %17, %21 : vector<32x8xf32>
    %c0_23 = arith.constant 0 : index
    %c6 = arith.constant 6 : index
    %23 = vector.load %arg7[%c0_23, %c6] : memref<32x24xf32, #tpu.memory_space<vmem>>, vector<32x8xf32>
    %c3 = arith.constant 3 : index
    %c0_24 = arith.constant 0 : index
    %c0_25 = arith.constant 0 : index
    %24 = vector.load %arg3[%c3, %c0_24, %c0_25] : memref<9x32x32xf32, #tpu.memory_space<vmem>>, vector<1x32x32xf32>
    %25 = vector.shape_cast %24 : vector<1x32x32xf32> to vector<32x32xf32>
    %cst_26 = arith.constant dense<0.000000e+00> : vector<32x8xf32>
    %26 = tpu.matmul %25, %23, %cst_26 {dimension_numbers = #tpu.dot_dimension_numbers<[1], [0], [0], [1], [0, 0, 1, 1], [], []>} : vector<32x32xf32>, vector<32x8xf32>, vector<32x8xf32> -> vector<32x8xf32>
    %27 = arith.addf %22, %26 : vector<32x8xf32>
    %c0_27 = arith.constant 0 : index
    %c8_28 = arith.constant 8 : index
    %28 = vector.load %arg7[%c0_27, %c8_28] : memref<32x24xf32, #tpu.memory_space<vmem>>, vector<32x8xf32>
    %c4_29 = arith.constant 4 : index
    %c0_30 = arith.constant 0 : index
    %c0_31 = arith.constant 0 : index
    %29 = vector.load %arg3[%c4_29, %c0_30, %c0_31] : memref<9x32x32xf32, #tpu.memory_space<vmem>>, vector<1x32x32xf32>
    %30 = vector.shape_cast %29 : vector<1x32x32xf32> to vector<32x32xf32>
    %cst_32 = arith.constant dense<0.000000e+00> : vector<32x8xf32>
    %31 = tpu.matmul %30, %28, %cst_32 {dimension_numbers = #tpu.dot_dimension_numbers<[1], [0], [0], [1], [0, 0, 1, 1], [], []>} : vector<32x32xf32>, vector<32x8xf32>, vector<32x8xf32> -> vector<32x8xf32>
    %32 = arith.addf %27, %31 : vector<32x8xf32>
    %c0_33 = arith.constant 0 : index
    %c10 = arith.constant 10 : index
    %33 = vector.load %arg7[%c0_33, %c10] : memref<32x24xf32, #tpu.memory_space<vmem>>, vector<32x8xf32>
    %c5 = arith.constant 5 : index
    %c0_34 = arith.constant 0 : index
    %c0_35 = arith.constant 0 : index
    %34 = vector.load %arg3[%c5, %c0_34, %c0_35] : memref<9x32x32xf32, #tpu.memory_space<vmem>>, vector<1x32x32xf32>
    %35 = vector.shape_cast %34 : vector<1x32x32xf32> to vector<32x32xf32>
    %cst_36 = arith.constant dense<0.000000e+00> : vector<32x8xf32>
    %36 = tpu.matmul %35, %33, %cst_36 {dimension_numbers = #tpu.dot_dimension_numbers<[1], [0], [0], [1], [0, 0, 1, 1], [], []>} : vector<32x32xf32>, vector<32x8xf32>, vector<32x8xf32> -> vector<32x8xf32>
    %37 = arith.addf %32, %36 : vector<32x8xf32>
    %c0_37 = arith.constant 0 : index
    %c12 = arith.constant 12 : index
    %38 = vector.load %arg7[%c0_37, %c12] : memref<32x24xf32, #tpu.memory_space<vmem>>, vector<32x8xf32>
    %c6_38 = arith.constant 6 : index
    %c0_39 = arith.constant 0 : index
    %c0_40 = arith.constant 0 : index
    %39 = vector.load %arg3[%c6_38, %c0_39, %c0_40] : memref<9x32x32xf32, #tpu.memory_space<vmem>>, vector<1x32x32xf32>
    %40 = vector.shape_cast %39 : vector<1x32x32xf32> to vector<32x32xf32>
    %cst_41 = arith.constant dense<0.000000e+00> : vector<32x8xf32>
    %41 = tpu.matmul %40, %38, %cst_41 {dimension_numbers = #tpu.dot_dimension_numbers<[1], [0], [0], [1], [0, 0, 1, 1], [], []>} : vector<32x32xf32>, vector<32x8xf32>, vector<32x8xf32> -> vector<32x8xf32>
    %42 = arith.addf %37, %41 : vector<32x8xf32>
    %c0_42 = arith.constant 0 : index
    %c14 = arith.constant 14 : index
    %43 = vector.load %arg7[%c0_42, %c14] : memref<32x24xf32, #tpu.memory_space<vmem>>, vector<32x8xf32>
    %c7 = arith.constant 7 : index
    %c0_43 = arith.constant 0 : index
    %c0_44 = arith.constant 0 : index
    %44 = vector.load %arg3[%c7, %c0_43, %c0_44] : memref<9x32x32xf32, #tpu.memory_space<vmem>>, vector<1x32x32xf32>
    %45 = vector.shape_cast %44 : vector<1x32x32xf32> to vector<32x32xf32>
    %cst_45 = arith.constant dense<0.000000e+00> : vector<32x8xf32>
    %46 = tpu.matmul %45, %43, %cst_45 {dimension_numbers = #tpu.dot_dimension_numbers<[1], [0], [0], [1], [0, 0, 1, 1], [], []>} : vector<32x32xf32>, vector<32x8xf32>, vector<32x8xf32> -> vector<32x8xf32>
    %47 = arith.addf %42, %46 : vector<32x8xf32>
    %c0_46 = arith.constant 0 : index
    %c16_47 = arith.constant 16 : index
    %48 = vector.load %arg7[%c0_46, %c16_47] : memref<32x24xf32, #tpu.memory_space<vmem>>, vector<32x8xf32>
    %c8_48 = arith.constant 8 : index
    %c0_49 = arith.constant 0 : index
    %c0_50 = arith.constant 0 : index
    %49 = vector.load %arg3[%c8_48, %c0_49, %c0_50] : memref<9x32x32xf32, #tpu.memory_space<vmem>>, vector<1x32x32xf32>
    %50 = vector.shape_cast %49 : vector<1x32x32xf32> to vector<32x32xf32>
    %cst_51 = arith.constant dense<0.000000e+00> : vector<32x8xf32>
    %51 = tpu.matmul %50, %48, %cst_51 {dimension_numbers = #tpu.dot_dimension_numbers<[1], [0], [0], [1], [0, 0, 1, 1], [], []>} : vector<32x32xf32>, vector<32x8xf32>, vector<32x8xf32> -> vector<32x8xf32>
    %52 = arith.addf %47, %51 : vector<32x8xf32>
    %cst_52 = arith.constant dense<0.000000e+00> : vector<8xf32>
    %53 = vector.multi_reduction <add>, %52, %cst_52 [0] : vector<32x8xf32> to vector<8xf32>
    %54 = vector.shape_cast %53 : vector<8xf32> to vector<1x8xf32>
    %cst_53 = arith.constant 3.200000e+01 : f32
    %55 = vector.broadcast %cst_53 : f32 to vector<1x8xf32>
    %56 = arith.divf %54, %55 : vector<1x8xf32>
    %57 = vector.broadcast %56 : vector<1x8xf32> to vector<32x8xf32>
    %58 = arith.subf %52, %57 : vector<32x8xf32>
    %59 = arith.mulf %58, %58 : vector<32x8xf32>
    %cst_54 = arith.constant dense<0.000000e+00> : vector<8xf32>
    %60 = vector.multi_reduction <add>, %59, %cst_54 [0] : vector<32x8xf32> to vector<8xf32>
    %61 = vector.shape_cast %60 : vector<8xf32> to vector<1x8xf32>
    %cst_55 = arith.constant 3.200000e+01 : f32
    %62 = vector.broadcast %cst_55 : f32 to vector<1x8xf32>
    %63 = arith.divf %61, %62 : vector<1x8xf32>
    %cst_56 = arith.constant 9.99999974E-6 : f32
    %64 = vector.broadcast %cst_56 : f32 to vector<1x8xf32>
    %65 = arith.addf %63, %64 : vector<1x8xf32>
    %66 = math.rsqrt %65 : vector<1x8xf32>
    %67 = vector.broadcast %66 : vector<1x8xf32> to vector<32x8xf32>
    %68 = arith.mulf %58, %67 : vector<32x8xf32>
    %c0_57 = arith.constant 0 : index
    %c0_58 = arith.constant 0 : index
    %69 = vector.load %arg4[%c0_57, %c0_58] : memref<32x1xf32, #tpu.memory_space<vmem>>, vector<32x1xf32>
    %70 = vector.broadcast %69 : vector<32x1xf32> to vector<32x8xf32>
    %71 = arith.mulf %68, %70 : vector<32x8xf32>
    %c0_59 = arith.constant 0 : index
    %c0_60 = arith.constant 0 : index
    %72 = vector.load %arg5[%c0_59, %c0_60] : memref<32x1xf32, #tpu.memory_space<vmem>>, vector<32x1xf32>
    %73 = vector.broadcast %72 : vector<32x1xf32> to vector<32x8xf32>
    %74 = arith.addf %71, %73 : vector<32x8xf32>
    %cst_61 = arith.constant 5.000000e-01 : f32
    %75 = vector.broadcast %cst_61 : f32 to vector<32x8xf32>
    %76 = arith.mulf %75, %74 : vector<32x8xf32>
    %cst_62 = arith.constant 0.707106769 : f32
    %77 = vector.broadcast %cst_62 : f32 to vector<32x8xf32>
    %78 = arith.mulf %74, %77 : vector<32x8xf32>
    %79 = math.absf %78 : vector<32x8xf32>
    %cst_63 = arith.constant 0.327591091 : f32
    %80 = vector.broadcast %cst_63 : f32 to vector<32x8xf32>
    %81 = arith.mulf %80, %79 : vector<32x8xf32>
    %cst_64 = arith.constant 1.000000e+00 : f32
    %82 = vector.broadcast %cst_64 : f32 to vector<32x8xf32>
    %83 = arith.addf %82, %81 : vector<32x8xf32>
    %84 = tpu.reciprocal %83 {approx = true} : vector<32x8xf32> -> vector<32x8xf32>
    %85 = arith.mulf %83, %84 : vector<32x8xf32>
    %cst_65 = arith.constant 2.000000e+00 : f32
    %86 = vector.broadcast %cst_65 : f32 to vector<32x8xf32>
    %87 = arith.subf %86, %85 : vector<32x8xf32>
    %88 = arith.mulf %84, %87 : vector<32x8xf32>
    %cst_66 = arith.constant 1.06140542 : f32
    %89 = vector.broadcast %cst_66 : f32 to vector<32x8xf32>
    %90 = arith.mulf %89, %88 : vector<32x8xf32>
    %cst_67 = arith.constant -1.45315206 : f32
    %91 = vector.broadcast %cst_67 : f32 to vector<32x8xf32>
    %92 = arith.addf %90, %91 : vector<32x8xf32>
    %93 = arith.mulf %92, %88 : vector<32x8xf32>
    %cst_68 = arith.constant 1.42141378 : f32
    %94 = vector.broadcast %cst_68 : f32 to vector<32x8xf32>
    %95 = arith.addf %93, %94 : vector<32x8xf32>
    %96 = arith.mulf %95, %88 : vector<32x8xf32>
    %cst_69 = arith.constant -0.284496725 : f32
    %97 = vector.broadcast %cst_69 : f32 to vector<32x8xf32>
    %98 = arith.addf %96, %97 : vector<32x8xf32>
    %99 = arith.mulf %98, %88 : vector<32x8xf32>
    %cst_70 = arith.constant 0.254829586 : f32
    %100 = vector.broadcast %cst_70 : f32 to vector<32x8xf32>
    %101 = arith.addf %99, %100 : vector<32x8xf32>
    %102 = arith.mulf %101, %88 : vector<32x8xf32>
    %cst_71 = arith.constant 0.000000e+00 : f32
    %103 = vector.broadcast %cst_71 : f32 to vector<32x8xf32>
    %104 = arith.subf %103, %79 : vector<32x8xf32>
    %105 = arith.mulf %104, %79 : vector<32x8xf32>
    %106 = math.exp %105 : vector<32x8xf32>
    %107 = arith.mulf %102, %106 : vector<32x8xf32>
    %cst_72 = arith.constant 1.000000e+00 : f32
    %108 = vector.broadcast %cst_72 : f32 to vector<32x8xf32>
    %109 = arith.subf %108, %107 : vector<32x8xf32>
    %cst_73 = arith.constant 0.000000e+00 : f32
    %110 = vector.broadcast %cst_73 : f32 to vector<32x8xf32>
    %111 = arith.cmpf oge, %78, %110 : vector<32x8xf32>
    %cst_74 = arith.constant 0.000000e+00 : f32
    %112 = vector.broadcast %cst_74 : f32 to vector<32x8xf32>
    %113 = arith.subf %112, %109 : vector<32x8xf32>
    %114 = arith.select %111, %109, %113 : vector<32x8xi1>, vector<32x8xf32>
    %cst_75 = arith.constant 1.000000e+00 : f32
    %115 = vector.broadcast %cst_75 : f32 to vector<32x8xf32>
    %116 = arith.addf %115, %114 : vector<32x8xf32>
    %117 = arith.mulf %76, %116 : vector<32x8xf32>
    %c0_76 = arith.constant 0 : index
    %c0_77 = arith.constant 0 : index
    %c0_78 = arith.constant 0 : index
    %118 = vector.load %arg6[%c0_76, %c0_77, %c0_78] : memref<1x32x8xf32, #tpu.memory_space<vmem>>, vector<1x32x8xf32>
    %119 = vector.shape_cast %118 : vector<1x32x8xf32> to vector<32x8xf32>
    %120 = vector.shape_cast %117 : vector<32x8xf32> to vector<1x32x8xf32>
    tpu.vector_store %arg6[%c0_76, %c0_77, %c0_78], %120 {strides = array<i32>} : memref<1x32x8xf32, #tpu.memory_space<vmem>>, vector<1x32x8xf32>,
    return
  }
  func.func @transform_0(%arg0: i32, %arg1: i32) -> (i32, i32, i32) {
    %c0_i32 = arith.constant 0 : i32
    %c0_i32_0 = arith.constant 0 : i32
    return %arg0, %c0_i32, %arg1 : i32, i32, i32
  }
  func.func @transform_1(%arg0: i32, %arg1: i32) -> (i32, i32, i32) {
    %c0_i32 = arith.constant 0 : i32
    %c0_i32_0 = arith.constant 0 : i32
    %c0_i32_1 = arith.constant 0 : i32
    %c0_i32_2 = arith.constant 0 : i32
    return %c0_i32, %c0_i32_0, %c0_i32_1 : i32, i32, i32
  }
  func.func @transform_2(%arg0: i32, %arg1: i32) -> (i32, i32) {
    %c0_i32 = arith.constant 0 : i32
    %c0_i32_0 = arith.constant 0 : i32
    %c0_i32_1 = arith.constant 0 : i32
    return %c0_i32, %c0_i32_0 : i32, i32
  }
  func.func @transform_3(%arg0: i32, %arg1: i32) -> (i32, i32) {
    %c0_i32 = arith.constant 0 : i32
    %c0_i32_0 = arith.constant 0 : i32
    %c0_i32_1 = arith.constant 0 : i32
    return %c0_i32, %c0_i32_0 : i32, i32
  }
  func.func @transform_4(%arg0: i32, %arg1: i32) -> (i32, i32, i32) {
    %c0_i32 = arith.constant 0 : i32
    %c0_i32_0 = arith.constant 0 : i32
    return %arg0, %c0_i32, %arg1 : i32, i32, i32
  }
}

</mosaic_0001>

<llo_original>
// kernel: tpu_custom_call.1
$region0: #{tpu_custom_call.1}
  #allocation0 [shape = 'u32[]', space=smem, size = 0x4, offset = 0x4, fixed_abs, tag = 'smem constant byte address 0x4 - core index']
  #allocation1 [shape = 'u32[72,128]{1,0:T(1,128)}', space=vmem, size = 0x9000, scoped, tag = 'internal scratch']
  #allocation2 [shape = 'f32[32,24]{1,0:T(8,128)}', space=vmem, size = 0x4000, scoped, tag = 'scratch operand']
  %s0 = inlined_call_operand.vmem [shape: f32[2,32,8], index: 0, kind: input, shape index: {}]
  %s1 = inlined_call_operand.hbm [shape: f32[9,32,32], index: 1, kind: input, shape index: {}]
  %s2 = inlined_call_operand.vmem [shape: f32[32,1], index: 2, kind: input, shape index: {}]
  %s3 = inlined_call_operand.vmem [shape: f32[32,1], index: 3, kind: input, shape index: {}]
  %s4 = inlined_call_operand.vmem [shape: f32[2,32,8], index: 4, kind: output, shape index: {}]
  %s5 = sld [smem:[#allocation0]]
  $region53: #{tpu_custom_call.1} parent=0
    _
  %s7 = ssub.s32 1, %s5
  %s8 = scalar_select 0, %s7, %s5
  $region1: #{tpu_custom_call.1} parent=0
    #allocation3 [shape = 'u8[147456]{0}', space=vmem, size = 0x24000, scoped, tag = 'input window, operand 1, single buffered']
    #allocation4 [shape = 's32[2]{0}', space=sflag, size = 0x8, scoped, tag = 'scoped memory for tpu_custom_call.1']
    %9 = vsyncpa [#allocation4], 0
    loop: start=0, step=1, limit=4
    $region2: #{tpu_custom_call.1} parent=1 // loop_pre_header
      _
    $region3: #{tpu_custom_call.1} parent=1 // loop_header
      %s11 = sphi 0, %s15
      %p12 = scmp.ge.s32.totalorder %s11, 4
      %s18 = sphi 0, %s30
      %s19 = sphi 0, %s26
      %s20 = sphi 0, %s18
      %s21 = sphi 0, %s19
      %s22 = sphi 0, %s20
      %s23 = sphi 0, %s21
      %s35 = sphi 0, %s37
      %s38 = sphi 0, %s35
      %s39 = sphi 0, %s38
      %s55 = sphi 0, %s39
      %s59 = sphi 0, %s59
      %s61 = sphi 0, %s59
      %s62 = sphi 0, %s61
      %s76 = sphi 0, %s62
      %s80 = sphi 0, %s80
      %s82 = sphi 0, %s80
      %s83 = sphi 0, %s82
      %s97 = sphi 0, %s83
      %s101 = sphi 0, %s101
      %s103 = sphi 0, %s101
      %s104 = sphi 0, %s103
      %s118 = sphi 0, %s104
      %s126 = sphi 0, %s128
      %s129 = sphi 0, %s126
      %s130 = sphi 0, %s129
      %s146 = sphi 0, %s130
    $region4: #{tpu_custom_call.1} parent=1 // loop_header_branch
      %14 = sbr.rel (%p12) target = $region8
    $region5: #{tpu_custom_call.1} parent=1 // loop_body
      %s16 = ssub.s32 %s11, 1
      %s17 = ssub.s32 %s11, 2
      %s24 = sadd.s32 1, %s19
      %p25 = scmp.ge.s32.totalorder %s24, 1
      %s26 = scalar_select %p25, 0, %s24
      %s27 = sadd.s32 1, %s18
      %s28 = scalar_select %p25, %s27, %s18
      %p29 = scmp.ge.s32.totalorder %s28, 2
      %s30 = scalar_select %p29, 0, %s28
      %s31 = ssub.s32 %s18, %s30
      %s32 = ssub.s32 %s19, %s26
      %s33 = sor.u32 %s31, %s32
      %p34 = scmp.eq.s32.totalorder %s33, 0
      %s36 = sadd.s32 %s35, 1
      %s37 = scalar_select %p34, %s35, %s36
      %p40 = pneg %p34
      %p41 = scmp.eq.s32.totalorder %s11, 1
      %p42 = por %p40, %p41
      %p43 = scmp.ne.s32.totalorder %s35, %s38
      %p44 = scmp.eq.s32.totalorder %s11, 0
      %p45 = por %p43, %p44
      %p46 = scmp.ne.s32.totalorder %s35, %s38
      %p47 = scmp.eq.s32.totalorder %s16, 1
      %p48 = por %p46, %p47
      %p49 = scmp.ne.s32.totalorder %s38, %s39
      %p50 = scmp.eq.s32.totalorder %s16, 0
      %p51 = por %p49, %p50
      %p52 = scmp.ne.s32.totalorder %s38, %s39
      %p53 = scmp.eq.s32.totalorder %s17, 1
      %p54 = por %p52, %p53
      %p56 = scmp.ne.s32.totalorder %s39, %s55
      %p57 = scmp.eq.s32.totalorder %s17, 0
      %p58 = por %p56, %p57
      %s60 = sadd.s32 %s59, 1
      %p63 = scmp.eq.s32.totalorder %s11, 1
      %p64 = scmp.ne.s32.totalorder %s59, %s61
      %p65 = scmp.eq.s32.totalorder %s11, 0
      %p66 = por %p64, %p65
      %p67 = scmp.ne.s32.totalorder %s59, %s61
      %p68 = scmp.eq.s32.totalorder %s16, 1
      %p69 = por %p67, %p68
      %p70 = scmp.ne.s32.totalorder %s61, %s62
      %p71 = scmp.eq.s32.totalorder %s16, 0
      %p72 = por %p70, %p71
      %p73 = scmp.ne.s32.totalorder %s61, %s62
      %p74 = scmp.eq.s32.totalorder %s17, 1
      %p75 = por %p73, %p74
      %p77 = scmp.ne.s32.totalorder %s62, %s76
      %p78 = scmp.eq.s32.totalorder %s17, 0
      %p79 = por %p77, %p78
      %s81 = sadd.s32 %s80, 1
      %p84 = scmp.eq.s32.totalorder %s11, 1
      %p85 = scmp.ne.s32.totalorder %s80, %s82
      %p86 = scmp.eq.s32.totalorder %s11, 0
      %p87 = por %p85, %p86
      %p88 = scmp.ne.s32.totalorder %s80, %s82
      %p89 = scmp.eq.s32.totalorder %s16, 1
      %p90 = por %p88, %p89
      %p91 = scmp.ne.s32.totalorder %s82, %s83
      %p92 = scmp.eq.s32.totalorder %s16, 0
      %p93 = por %p91, %p92
      %p94 = scmp.ne.s32.totalorder %s82, %s83
      %p95 = scmp.eq.s32.totalorder %s17, 1
      %p96 = por %p94, %p95
      %p98 = scmp.ne.s32.totalorder %s83, %s97
      %p99 = scmp.eq.s32.totalorder %s17, 0
      %p100 = por %p98, %p99
      %s102 = sadd.s32 %s101, 1
      %p105 = scmp.eq.s32.totalorder %s11, 1
      %p106 = scmp.ne.s32.totalorder %s101, %s103
      %p107 = scmp.eq.s32.totalorder %s11, 0
      %p108 = por %p106, %p107
      %p109 = scmp.ne.s32.totalorder %s101, %s103
      %p110 = scmp.eq.s32.totalorder %s16, 1
      %p111 = por %p109, %p110
      %p112 = scmp.ne.s32.totalorder %s103, %s104
      %p113 = scmp.eq.s32.totalorder %s16, 0
      %p114 = por %p112, %p113
      %p115 = scmp.ne.s32.totalorder %s103, %s104
      %p116 = scmp.eq.s32.totalorder %s17, 1
      %p117 = por %p115, %p116
      %p119 = scmp.ne.s32.totalorder %s104, %s118
      %p120 = scmp.eq.s32.totalorder %s17, 0
      %p121 = por %p119, %p120
      %s122 = ssub.s32 %s18, %s30
      %s123 = ssub.s32 %s19, %s26
      %s124 = sor.u32 %s122, %s123
      %p125 = scmp.eq.s32.totalorder %s124, 0
      %s127 = sadd.s32 %s126, 1
      %s128 = scalar_select %p125, %s126, %s127
      %p131 = pneg %p125
      %p132 = scmp.eq.s32.totalorder %s11, 1
      %p133 = por %p131, %p132
      %p134 = scmp.ne.s32.totalorder %s126, %s129
      %p135 = scmp.eq.s32.totalorder %s11, 0
      %p136 = por %p134, %p135
      %p137 = scmp.ne.s32.totalorder %s126, %s129
      %p138 = scmp.eq.s32.totalorder %s16, 1
      %p139 = por %p137, %p138
      %p140 = scmp.ne.s32.totalorder %s129, %s130
      %p141 = scmp.eq.s32.totalorder %s16, 0
      %p142 = por %p140, %p141
      %p143 = scmp.ne.s32.totalorder %s129, %s130
      %p144 = scmp.eq.s32.totalorder %s17, 1
      %p145 = por %p143, %p144
      %p147 = scmp.ne.s32.totalorder %s130, %s146
      %p148 = scmp.eq.s32.totalorder %s17, 0
      %p149 = por %p147, %p148
      %p150 = scmp.le.s32.totalorder 1, %s11
      %p151 = scmp.lt.s32.totalorder %s11, 3
      %p152 = pnand %p150, %p151
      %p153 = pneg %p152
      // Predicated region
      $region9: #{tpu_custom_call.1} parent=5 // pred_check
        _
      $region10: #{tpu_custom_call.1} parent=5 // pred_check_branch
        %155 = sbr.rel (%p152) target = $region12
      $region11: #{tpu_custom_call.1} parent=5 // pred_region
        %s156 = ssub.s32 %s11, 1
        // Predicated region
        $region13: #{tpu_custom_call.1} parent=11 // pred_check
          %p157 = pneg %p72
        $region14: #{tpu_custom_call.1} parent=11 // pred_check_branch
          %159 = sbr.rel (%p157) target = $region16
        $region15: #{tpu_custom_call.1} parent=11 // pred_region
          %161 = vsyncadd [#allocation4], 0
          %s162 = sshll.u32 %s1, 4
          %s163 = int_to_ptr.hbm [resolvable:$true] %s162
          %s164 = sshll.u32 [#allocation3], 4
          %s165 = int_to_ptr.vmem [resolvable:$true] %s164
          %170 = dma.hbm_to_vmem [thread:$0]  %s163, 4608, %s165, [#allocation4], 128, 128, 8
        $region16: #{tpu_custom_call.1} parent=11 // pred_fallthru
          _
        // Predicated region
        $region17: #{tpu_custom_call.1} parent=11 // pred_check
          %p171 = pneg %p93
        $region18: #{tpu_custom_call.1} parent=11 // pred_check_branch
          %173 = sbr.rel (%p171) target = $region20
        $region19: #{tpu_custom_call.1} parent=11 // pred_region
          _
        $region20: #{tpu_custom_call.1} parent=11 // pred_fallthru
          _
        // Predicated region
        $region21: #{tpu_custom_call.1} parent=11 // pred_check
          %p174 = pneg %p114
        $region22: #{tpu_custom_call.1} parent=11 // pred_check_branch
          %176 = sbr.rel (%p174) target = $region24
        $region23: #{tpu_custom_call.1} parent=11 // pred_region
          _
        $region24: #{tpu_custom_call.1} parent=11 // pred_fallthru
          _
      $region12: #{tpu_custom_call.1} parent=5 // pred_fallthru
        _
      %p177 = scmp.lt.s32.totalorder %s11, 2
      // Predicated region
      $region25: #{tpu_custom_call.1} parent=5 // pred_check
        %p178 = pneg %p177
      $region26: #{tpu_custom_call.1} parent=5 // pred_check_branch
        %180 = sbr.rel (%p178) target = $region28
      $region27: #{tpu_custom_call.1} parent=5 // pred_region
        // Predicated region
        $region29: #{tpu_custom_call.1} parent=27 // pred_check
          %p181 = pneg %p45
        $region30: #{tpu_custom_call.1} parent=27 // pred_check_branch
          %183 = sbr.rel (%p181) target = $region32
        $region31: #{tpu_custom_call.1} parent=27 // pred_region
          %p184 = scmp.lt.s32.totalorder %s18, 1
          %s185 = scalar_select %p184, %s18, 1
          %p186 = scmp.lt.s32.totalorder %s19, 0
          %s187 = scalar_select %p186, %s19, 0
          %s188 = smul.addr %s185, 4
          %s189 = sadd.s32 %s187, %s188
          %s190 = smul.addr %s189, 8
          %s191 = scalar_lea.vmem %s0, %s190
        $region32: #{tpu_custom_call.1} parent=27 // pred_fallthru
          _
      $region28: #{tpu_custom_call.1} parent=5 // pred_fallthru
        _
      %p192 = scmp.le.s32.totalorder 1, %s11
      %p193 = scmp.lt.s32.totalorder %s11, 3
      %p194 = pnand %p192, %p193
      %p195 = pneg %p194
      // Predicated region
      $region33: #{tpu_custom_call.1} parent=5 // pred_check
        _
      $region34: #{tpu_custom_call.1} parent=5 // pred_check_branch
        %197 = sbr.rel (%p194) target = $region36
      $region35: #{tpu_custom_call.1} parent=5 // pred_region
        %s198 = ssub.s32 %s11, 1
        // Predicated region
        $region37: #{tpu_custom_call.1} parent=35 // pred_check
          %p199 = pneg %p72
        $region38: #{tpu_custom_call.1} parent=35 // pred_check_branch
          %201 = sbr.rel (%p199) target = $region40
        $region39: #{tpu_custom_call.1} parent=35 // pred_region
          %203 = dma.done [#allocation4], 4608
        $region40: #{tpu_custom_call.1} parent=35 // pred_fallthru
          _
        %p204 = scmp.lt.s32.totalorder %s20, 1
        %s205 = scalar_select %p204, %s20, 1
        %p206 = scmp.lt.s32.totalorder %s21, 0
        %s207 = scalar_select %p206, %s21, 0
        %s208 = smul.addr %s205, 4
        %s209 = sadd.s32 %s207, %s208
        %s210 = smul.addr %s209, 8
        %s211 = scalar_lea.vmem %s0, %s210
        %p212 = pneg %p51
        %p213 = pneg %p48
        %p214 = pneg %p72
        %p215 = pneg %p69
        %p216 = pneg %p93
        %p217 = pneg %p90
        %p218 = pneg %p114
        %p219 = pneg %p111
        %p220 = pneg %p142
        %p221 = pneg %p139
        %p222 = scmp.lt.s32.totalorder %s20, 1
        %s223 = scalar_select %p222, %s20, 1
        %p224 = scmp.lt.s32.totalorder %s21, 0
        %s225 = scalar_select %p224, %s21, 0
        %s226 = smul.addr %s223, 4
        %s227 = sadd.s32 %s225, %s226
        %s228 = smul.addr %s227, 8
        %s229 = scalar_lea.vmem %s4, %s228
        %p230 = scmp.lt.s32.totalorder %s20, 1
        %s231 = scalar_select %p230, %s20, 1
        %p232 = scmp.lt.s32.totalorder %s21, 0
        %s233 = scalar_select %p232, %s21, 0
        %s234 = smul.addr %s231, 4
        %s235 = sadd.s32 %s233, %s234
        %s236 = smul.addr %s235, 8
        %s237 = scalar_lea.vmem %s0, %s236
        %p238 = scmp.lt.s32.totalorder %s20, 1
        %s239 = scalar_select %p238, %s20, 1
        %p240 = scmp.lt.s32.totalorder %s21, 0
        %s241 = scalar_select %p240, %s21, 0
        %s242 = smul.addr %s239, 4
        %s243 = sadd.s32 %s241, %s242
        %s244 = smul.addr %s243, 8
        %s245 = scalar_lea.vmem %s4, %s244
        %v246 = vld [vmem:[%s237] sm:$0xff]
        %v247 = vld [vmem:[%s237 + $0x8] sm:$0xff]
        %v248 = vld [vmem:[%s237 + $0x10] sm:$0xff]
        %v249 = vld [vmem:[%s237 + $0x18] sm:$0xff]
        %vm250 = vcmask 64512
        %251 = vst.msk [vmem:[#allocation2] sm:$0xff] %vm250, 0.0
        %252 = vst.msk [vmem:[#allocation2 + $0x8] sm:$0xff] %vm250, 0.0
        %253 = vst.msk [vmem:[#allocation2 + $0x10] sm:$0xff] %vm250, 0.0
        %254 = vst.msk [vmem:[#allocation2 + $0x18] sm:$0xff] %vm250, 0.0
        %259 = vrot.lane.b32.xlu0 %v246, 8
        %v260 = vpop.permute.xlu0 %259
        %261 = vrot.lane.b32.xlu0 %v247, 8
        %v262 = vpop.permute.xlu0 %261
        %263 = vrot.lane.b32.xlu0 %v248, 8
        %v264 = vpop.permute.xlu0 %263
        %265 = vrot.lane.b32.xlu0 %v249, 8
        %v266 = vpop.permute.xlu0 %265
        %vm271 = vcmask 130112
        %272 = vst.msk [vmem:[#allocation2] sm:$0xff] %vm271, %v260
        %273 = vst.msk [vmem:[#allocation2 + $0x8] sm:$0xff] %vm271, %v262
        %274 = vst.msk [vmem:[#allocation2 + $0x10] sm:$0xff] %vm271, %v264
        %275 = vst.msk [vmem:[#allocation2 + $0x18] sm:$0xff] %vm271, %v266
        %vm276 = vcmask 195712
        %277 = vst.msk [vmem:[#allocation2] sm:$0xff] %vm276, 0.0
        %278 = vst.msk [vmem:[#allocation2 + $0x8] sm:$0xff] %vm276, 0.0
        %279 = vst.msk [vmem:[#allocation2 + $0x10] sm:$0xff] %vm276, 0.0
        %280 = vst.msk [vmem:[#allocation2 + $0x18] sm:$0xff] %vm276, 0.0
        %v281 = vld [vmem:[#allocation2] sm:$0xff]
        %v282 = vld [vmem:[#allocation2 + $0x8] sm:$0xff]
        %v283 = vld [vmem:[#allocation2 + $0x10] sm:$0xff]
        %v284 = vld [vmem:[#allocation2 + $0x18] sm:$0xff]
        %v285 = vld [vmem:[#allocation3] sm:$0xff]
        %v286 = vld [vmem:[#allocation3 + $0x8] sm:$0xff]
        %v287 = vld [vmem:[#allocation3 + $0x10] sm:$0xff]
        %v288 = vld [vmem:[#allocation3 + $0x18] sm:$0xff]
        %s289 = scalar_lea.vmem [#allocation3], 32
        %v290 = vld [vmem:[%s289] sm:$0xff]
        %v291 = vld [vmem:[%s289 + $0x8] sm:$0xff]
        %v292 = vld [vmem:[%s289 + $0x10] sm:$0xff]
        %v293 = vld [vmem:[%s289 + $0x18] sm:$0xff]
        %298 = vrot.lane.b32.xlu0 %v281, 126
        %v299 = vpop.permute.xlu0 %298
        %300 = vrot.lane.b32.xlu0 %v282, 126
        %v301 = vpop.permute.xlu0 %300
        %302 = vrot.lane.b32.xlu0 %v283, 126
        %v303 = vpop.permute.xlu0 %302
        %304 = vrot.lane.b32.xlu0 %v284, 126
        %v305 = vpop.permute.xlu0 %304
        %vm310 = vcmask 261120
        %v312 = vsel %vm310, %v290, 0
        %v315 = vsel %vm310, %v291, 0
        %v318 = vsel %vm310, %v292, 0
        %v321 = vsel %vm310, %v293, 0
        %323 = vmatpush.msra.mxu0 0.0
        %324 = vmatpush.msra.mxu0 0.0
        %325 = vmatpush.msra.mxu0 0.0
        %326 = vmatpush.msra.mxu0 0.0
        %327 = vmatpush.msra.mxu0 0.0
        %328 = vmatpush.msra.mxu0 0.0
        %329 = vmatpush.msra.mxu0 0.0
        %330 = vmatpush.msra.mxu0 0.0
        %331 = vmatpush.msra.mxu0 0.0
        %332 = vmatpush.msra.mxu0 0.0
        %333 = vmatpush.msra.mxu0 0.0
        %334 = vmatpush.msra.mxu0 0.0
        %335 = vmatpush.msra.mxu0 %v305
        %336 = vmatpush.msra.mxu0 %v303
        %337 = vmatpush.msra.mxu0 %v301
        %338 = vmatpush.msra.mxu0 %v299
        %339 = vmatmul.f32.gmra.mxu0 %v312
        %v340 = vpop.f32.mrf.mxu0
        %v341 = vadd.f32 0.0, %v340
        %342 = vmatmul.f32.gmra.mxu0 %v315
        %v343 = vpop.f32.mrf.mxu0
        %v344 = vadd.f32 0.0, %v343
        %345 = vmatmul.f32.gmra.mxu0 %v318
        %v346 = vpop.f32.mrf.mxu0
        %v347 = vadd.f32 0.0, %v346
        %348 = vmatmul.f32.gmra.mxu0 %v321
        %v349 = vpop.f32.mrf.mxu0
        %v350 = vadd.f32 0.0, %v349
        %351 = vdwg.mxu0
        %v353 = vsel %vm310, %v285, 0
        %v356 = vsel %vm310, %v286, 0
        %v359 = vsel %vm310, %v287, 0
        %v362 = vsel %vm310, %v288, 0
        %364 = vmatpush.msra.mxu0 0.0
        %365 = vmatpush.msra.mxu0 0.0
        %366 = vmatpush.msra.mxu0 0.0
        %367 = vmatpush.msra.mxu0 0.0
        %368 = vmatpush.msra.mxu0 0.0
        %369 = vmatpush.msra.mxu0 0.0
        %370 = vmatpush.msra.mxu0 0.0
        %371 = vmatpush.msra.mxu0 0.0
        %372 = vmatpush.msra.mxu0 0.0
        %373 = vmatpush.msra.mxu0 0.0
        %374 = vmatpush.msra.mxu0 0.0
        %375 = vmatpush.msra.mxu0 0.0
        %376 = vmatpush.msra.mxu0 %v284
        %377 = vmatpush.msra.mxu0 %v283
        %378 = vmatpush.msra.mxu0 %v282
        %379 = vmatpush.msra.mxu0 %v281
        %380 = vmatmul.f32.gmra.mxu0 %v353
        %v381 = vpop.f32.mrf.mxu0
        %v382 = vadd.f32 %v341, %v381
        %383 = vmatmul.f32.gmra.mxu0 %v356
        %v384 = vpop.f32.mrf.mxu0
        %v385 = vadd.f32 %v344, %v384
        %386 = vmatmul.f32.gmra.mxu0 %v359
        %v387 = vpop.f32.mrf.mxu0
        %v388 = vadd.f32 %v347, %v387
        %389 = vmatmul.f32.gmra.mxu0 %v362
        %v390 = vpop.f32.mrf.mxu0
        %v391 = vadd.f32 %v350, %v390
        %392 = vdwg.mxu0
        %s393 = scalar_lea.vmem [#allocation3], 64
        %v394 = vld [vmem:[%s393] sm:$0xff]
        %v395 = vld [vmem:[%s393 + $0x8] sm:$0xff]
        %v396 = vld [vmem:[%s393 + $0x10] sm:$0xff]
        %v397 = vld [vmem:[%s393 + $0x18] sm:$0xff]
        %398 = vrot.lane.b32.xlu0 %v281, 124
        %v399 = vpop.permute.xlu0 %398
        %400 = vrot.lane.b32.xlu0 %v282, 124
        %v401 = vpop.permute.xlu0 %400
        %402 = vrot.lane.b32.xlu0 %v283, 124
        %v403 = vpop.permute.xlu0 %402
        %404 = vrot.lane.b32.xlu0 %v284, 124
        %v405 = vpop.permute.xlu0 %404
        %v411 = vsel %vm310, %v394, 0
        %v414 = vsel %vm310, %v395, 0
        %v417 = vsel %vm310, %v396, 0
        %v420 = vsel %vm310, %v397, 0
        %422 = vmatpush.msra.mxu0 0.0
        %423 = vmatpush.msra.mxu0 0.0
        %424 = vmatpush.msra.mxu0 0.0
        %425 = vmatpush.msra.mxu0 0.0
        %426 = vmatpush.msra.mxu0 0.0
        %427 = vmatpush.msra.mxu0 0.0
        %428 = vmatpush.msra.mxu0 0.0
        %429 = vmatpush.msra.mxu0 0.0
        %430 = vmatpush.msra.mxu0 0.0
        %431 = vmatpush.msra.mxu0 0.0
        %432 = vmatpush.msra.mxu0 0.0
        %433 = vmatpush.msra.mxu0 0.0
        %434 = vmatpush.msra.mxu0 %v405
        %435 = vmatpush.msra.mxu0 %v403
        %436 = vmatpush.msra.mxu0 %v401
        %437 = vmatpush.msra.mxu0 %v399
        %438 = vmatmul.f32.gmra.mxu0 %v411
        %v439 = vpop.f32.mrf.mxu0
        %v440 = vadd.f32 0.0, %v439
        %441 = vmatmul.f32.gmra.mxu0 %v414
        %v442 = vpop.f32.mrf.mxu0
        %v443 = vadd.f32 0.0, %v442
        %444 = vmatmul.f32.gmra.mxu0 %v417
        %v445 = vpop.f32.mrf.mxu0
        %v446 = vadd.f32 0.0, %v445
        %447 = vmatmul.f32.gmra.mxu0 %v420
        %v448 = vpop.f32.mrf.mxu0
        %v449 = vadd.f32 0.0, %v448
        %450 = vdwg.mxu0
        %v451 = vadd.f32 %v382, %v440
        %v452 = vadd.f32 %v385, %v443
        %v453 = vadd.f32 %v388, %v446
        %v454 = vadd.f32 %v391, %v449
        %s455 = scalar_lea.vmem [#allocation3], 96
        %v456 = vld [vmem:[%s455] sm:$0xff]
        %v457 = vld [vmem:[%s455 + $0x8] sm:$0xff]
        %v458 = vld [vmem:[%s455 + $0x10] sm:$0xff]
        %v459 = vld [vmem:[%s455 + $0x18] sm:$0xff]
        %460 = vrot.lane.b32.xlu0 %v281, 122
        %v461 = vpop.permute.xlu0 %460
        %462 = vrot.lane.b32.xlu0 %v282, 122
        %v463 = vpop.permute.xlu0 %462
        %464 = vrot.lane.b32.xlu0 %v283, 122
        %v465 = vpop.permute.xlu0 %464
        %466 = vrot.lane.b32.xlu0 %v284, 122
        %v467 = vpop.permute.xlu0 %466
        %v473 = vsel %vm310, %v456, 0
        %v476 = vsel %vm310, %v457, 0
        %v479 = vsel %vm310, %v458, 0
        %v482 = vsel %vm310, %v459, 0
        %484 = vmatpush.msra.mxu0 0.0
        %485 = vmatpush.msra.mxu0 0.0
        %486 = vmatpush.msra.mxu0 0.0
        %487 = vmatpush.msra.mxu0 0.0
        %488 = vmatpush.msra.mxu0 0.0
        %489 = vmatpush.msra.mxu0 0.0
        %490 = vmatpush.msra.mxu0 0.0
        %491 = vmatpush.msra.mxu0 0.0
        %492 = vmatpush.msra.mxu0 0.0
        %493 = vmatpush.msra.mxu0 0.0
        %494 = vmatpush.msra.mxu0 0.0
        %495 = vmatpush.msra.mxu0 0.0
        %496 = vmatpush.msra.mxu0 %v467
        %497 = vmatpush.msra.mxu0 %v465
        %498 = vmatpush.msra.mxu0 %v463
        %499 = vmatpush.msra.mxu0 %v461
        %500 = vmatmul.f32.gmra.mxu0 %v473
        %v501 = vpop.f32.mrf.mxu0
        %v502 = vadd.f32 0.0, %v501
        %503 = vmatmul.f32.gmra.mxu0 %v476
        %v504 = vpop.f32.mrf.mxu0
        %v505 = vadd.f32 0.0, %v504
        %506 = vmatmul.f32.gmra.mxu0 %v479
        %v507 = vpop.f32.mrf.mxu0
        %v508 = vadd.f32 0.0, %v507
        %509 = vmatmul.f32.gmra.mxu0 %v482
        %v510 = vpop.f32.mrf.mxu0
        %v511 = vadd.f32 0.0, %v510
        %512 = vdwg.mxu0
        %v513 = vadd.f32 %v451, %v502
        %v514 = vadd.f32 %v452, %v505
        %v515 = vadd.f32 %v453, %v508
        %v516 = vadd.f32 %v454, %v511
        %s517 = scalar_lea.vmem [#allocation3], 128
        %v518 = vld [vmem:[%s517] sm:$0xff]
        %v519 = vld [vmem:[%s517 + $0x8] sm:$0xff]
        %v520 = vld [vmem:[%s517 + $0x10] sm:$0xff]
        %v521 = vld [vmem:[%s517 + $0x18] sm:$0xff]
        %522 = vrot.lane.b32.xlu0 %v281, 120
        %v523 = vpop.permute.xlu0 %522
        %524 = vrot.lane.b32.xlu0 %v282, 120
        %v525 = vpop.permute.xlu0 %524
        %526 = vrot.lane.b32.xlu0 %v283, 120
        %v527 = vpop.permute.xlu0 %526
        %528 = vrot.lane.b32.xlu0 %v284, 120
        %v529 = vpop.permute.xlu0 %528
        %v535 = vsel %vm310, %v518, 0
        %v538 = vsel %vm310, %v519, 0
        %v541 = vsel %vm310, %v520, 0
        %v544 = vsel %vm310, %v521, 0
        %546 = vmatpush.msra.mxu0 0.0
        %547 = vmatpush.msra.mxu0 0.0
        %548 = vmatpush.msra.mxu0 0.0
        %549 = vmatpush.msra.mxu0 0.0
        %550 = vmatpush.msra.mxu0 0.0
        %551 = vmatpush.msra.mxu0 0.0
        %552 = vmatpush.msra.mxu0 0.0
        %553 = vmatpush.msra.mxu0 0.0
        %554 = vmatpush.msra.mxu0 0.0
        %555 = vmatpush.msra.mxu0 0.0
        %556 = vmatpush.msra.mxu0 0.0
        %557 = vmatpush.msra.mxu0 0.0
        %558 = vmatpush.msra.mxu0 %v529
        %559 = vmatpush.msra.mxu0 %v527
        %560 = vmatpush.msra.mxu0 %v525
        %561 = vmatpush.msra.mxu0 %v523
        %562 = vmatmul.f32.gmra.mxu0 %v535
        %v563 = vpop.f32.mrf.mxu0
        %v564 = vadd.f32 0.0, %v563
        %565 = vmatmul.f32.gmra.mxu0 %v538
        %v566 = vpop.f32.mrf.mxu0
        %v567 = vadd.f32 0.0, %v566
        %568 = vmatmul.f32.gmra.mxu0 %v541
        %v569 = vpop.f32.mrf.mxu0
        %v570 = vadd.f32 0.0, %v569
        %571 = vmatmul.f32.gmra.mxu0 %v544
        %v572 = vpop.f32.mrf.mxu0
        %v573 = vadd.f32 0.0, %v572
        %574 = vdwg.mxu0
        %v575 = vadd.f32 %v513, %v564
        %v576 = vadd.f32 %v514, %v567
        %v577 = vadd.f32 %v515, %v570
        %v578 = vadd.f32 %v516, %v573
        %s579 = scalar_lea.vmem [#allocation3], 160
        %v580 = vld [vmem:[%s579] sm:$0xff]
        %v581 = vld [vmem:[%s579 + $0x8] sm:$0xff]
        %v582 = vld [vmem:[%s579 + $0x10] sm:$0xff]
        %v583 = vld [vmem:[%s579 + $0x18] sm:$0xff]
        %584 = vrot.lane.b32.xlu0 %v281, 118
        %v585 = vpop.permute.xlu0 %584
        %586 = vrot.lane.b32.xlu0 %v282, 118
        %v587 = vpop.permute.xlu0 %586
        %588 = vrot.lane.b32.xlu0 %v283, 118
        %v589 = vpop.permute.xlu0 %588
        %590 = vrot.lane.b32.xlu0 %v284, 118
        %v591 = vpop.permute.xlu0 %590
        %v597 = vsel %vm310, %v580, 0
        %v600 = vsel %vm310, %v581, 0
        %v603 = vsel %vm310, %v582, 0
        %v606 = vsel %vm310, %v583, 0
        %608 = vmatpush.msra.mxu0 0.0
        %609 = vmatpush.msra.mxu0 0.0
        %610 = vmatpush.msra.mxu0 0.0
        %611 = vmatpush.msra.mxu0 0.0
        %612 = vmatpush.msra.mxu0 0.0
        %613 = vmatpush.msra.mxu0 0.0
        %614 = vmatpush.msra.mxu0 0.0
        %615 = vmatpush.msra.mxu0 0.0
        %616 = vmatpush.msra.mxu0 0.0
        %617 = vmatpush.msra.mxu0 0.0
        %618 = vmatpush.msra.mxu0 0.0
        %619 = vmatpush.msra.mxu0 0.0
        %620 = vmatpush.msra.mxu0 %v591
        %621 = vmatpush.msra.mxu0 %v589
        %622 = vmatpush.msra.mxu0 %v587
        %623 = vmatpush.msra.mxu0 %v585
        %624 = vmatmul.f32.gmra.mxu0 %v597
        %v625 = vpop.f32.mrf.mxu0
        %v626 = vadd.f32 0.0, %v625
        %627 = vmatmul.f32.gmra.mxu0 %v600
        %v628 = vpop.f32.mrf.mxu0
        %v629 = vadd.f32 0.0, %v628
        %630 = vmatmul.f32.gmra.mxu0 %v603
        %v631 = vpop.f32.mrf.mxu0
        %v632 = vadd.f32 0.0, %v631
        %633 = vmatmul.f32.gmra.mxu0 %v606
        %v634 = vpop.f32.mrf.mxu0
        %v635 = vadd.f32 0.0, %v634
        %636 = vdwg.mxu0
        %v637 = vadd.f32 %v575, %v626
        %v638 = vadd.f32 %v576, %v629
        %v639 = vadd.f32 %v577, %v632
        %v640 = vadd.f32 %v578, %v635
        %s641 = scalar_lea.vmem [#allocation3], 192
        %v642 = vld [vmem:[%s641] sm:$0xff]
        %v643 = vld [vmem:[%s641 + $0x8] sm:$0xff]
        %v644 = vld [vmem:[%s641 + $0x10] sm:$0xff]
        %v645 = vld [vmem:[%s641 + $0x18] sm:$0xff]
        %646 = vrot.lane.b32.xlu0 %v281, 116
        %v647 = vpop.permute.xlu0 %646
        %648 = vrot.lane.b32.xlu0 %v282, 116
        %v649 = vpop.permute.xlu0 %648
        %650 = vrot.lane.b32.xlu0 %v283, 116
        %v651 = vpop.permute.xlu0 %650
        %652 = vrot.lane.b32.xlu0 %v284, 116
        %v653 = vpop.permute.xlu0 %652
        %v659 = vsel %vm310, %v642, 0
        %v662 = vsel %vm310, %v643, 0
        %v665 = vsel %vm310, %v644, 0
        %v668 = vsel %vm310, %v645, 0
        %670 = vmatpush.msra.mxu0 0.0
        %671 = vmatpush.msra.mxu0 0.0
        %672 = vmatpush.msra.mxu0 0.0
        %673 = vmatpush.msra.mxu0 0.0
        %674 = vmatpush.msra.mxu0 0.0
        %675 = vmatpush.msra.mxu0 0.0
        %676 = vmatpush.msra.mxu0 0.0
        %677 = vmatpush.msra.mxu0 0.0
        %678 = vmatpush.msra.mxu0 0.0
        %679 = vmatpush.msra.mxu0 0.0
        %680 = vmatpush.msra.mxu0 0.0
        %681 = vmatpush.msra.mxu0 0.0
        %682 = vmatpush.msra.mxu0 %v653
        %683 = vmatpush.msra.mxu0 %v651
        %684 = vmatpush.msra.mxu0 %v649
        %685 = vmatpush.msra.mxu0 %v647
        %686 = vmatmul.f32.gmra.mxu0 %v659
        %v687 = vpop.f32.mrf.mxu0
        %v688 = vadd.f32 0.0, %v687
        %689 = vmatmul.f32.gmra.mxu0 %v662
        %v690 = vpop.f32.mrf.mxu0
        %v691 = vadd.f32 0.0, %v690
        %692 = vmatmul.f32.gmra.mxu0 %v665
        %v693 = vpop.f32.mrf.mxu0
        %v694 = vadd.f32 0.0, %v693
        %695 = vmatmul.f32.gmra.mxu0 %v668
        %v696 = vpop.f32.mrf.mxu0
        %v697 = vadd.f32 0.0, %v696
        %698 = vdwg.mxu0
        %v699 = vadd.f32 %v637, %v688
        %v700 = vadd.f32 %v638, %v691
        %v701 = vadd.f32 %v639, %v694
        %v702 = vadd.f32 %v640, %v697
        %s703 = scalar_lea.vmem [#allocation3], 224
        %v704 = vld [vmem:[%s703] sm:$0xff]
        %v705 = vld [vmem:[%s703 + $0x8] sm:$0xff]
        %v706 = vld [vmem:[%s703 + $0x10] sm:$0xff]
        %v707 = vld [vmem:[%s703 + $0x18] sm:$0xff]
        %708 = vrot.lane.b32.xlu0 %v281, 114
        %v709 = vpop.permute.xlu0 %708
        %710 = vrot.lane.b32.xlu0 %v282, 114
        %v711 = vpop.permute.xlu0 %710
        %712 = vrot.lane.b32.xlu0 %v283, 114
        %v713 = vpop.permute.xlu0 %712
        %714 = vrot.lane.b32.xlu0 %v284, 114
        %v715 = vpop.permute.xlu0 %714
        %v721 = vsel %vm310, %v704, 0
        %v724 = vsel %vm310, %v705, 0
        %v727 = vsel %vm310, %v706, 0
        %v730 = vsel %vm310, %v707, 0
        %732 = vmatpush.msra.mxu0 0.0
        %733 = vmatpush.msra.mxu0 0.0
        %734 = vmatpush.msra.mxu0 0.0
        %735 = vmatpush.msra.mxu0 0.0
        %736 = vmatpush.msra.mxu0 0.0
        %737 = vmatpush.msra.mxu0 0.0
        %738 = vmatpush.msra.mxu0 0.0
        %739 = vmatpush.msra.mxu0 0.0
        %740 = vmatpush.msra.mxu0 0.0
        %741 = vmatpush.msra.mxu0 0.0
        %742 = vmatpush.msra.mxu0 0.0
        %743 = vmatpush.msra.mxu0 0.0
        %744 = vmatpush.msra.mxu0 %v715
        %745 = vmatpush.msra.mxu0 %v713
        %746 = vmatpush.msra.mxu0 %v711
        %747 = vmatpush.msra.mxu0 %v709
        %748 = vmatmul.f32.gmra.mxu0 %v721
        %v749 = vpop.f32.mrf.mxu0
        %v750 = vadd.f32 0.0, %v749
        %751 = vmatmul.f32.gmra.mxu0 %v724
        %v752 = vpop.f32.mrf.mxu0
        %v753 = vadd.f32 0.0, %v752
        %754 = vmatmul.f32.gmra.mxu0 %v727
        %v755 = vpop.f32.mrf.mxu0
        %v756 = vadd.f32 0.0, %v755
        %757 = vmatmul.f32.gmra.mxu0 %v730
        %v758 = vpop.f32.mrf.mxu0
        %v759 = vadd.f32 0.0, %v758
        %760 = vdwg.mxu0
        %v761 = vadd.f32 %v699, %v750
        %v762 = vadd.f32 %v700, %v753
        %v763 = vadd.f32 %v701, %v756
        %v764 = vadd.f32 %v702, %v759
        %s765 = scalar_lea.vmem [#allocation3], 256
        %v766 = vld [vmem:[%s765] sm:$0xff]
        %v767 = vld [vmem:[%s765 + $0x8] sm:$0xff]
        %v768 = vld [vmem:[%s765 + $0x10] sm:$0xff]
        %v769 = vld [vmem:[%s765 + $0x18] sm:$0xff]
        %770 = vrot.lane.b32.xlu0 %v281, 112
        %v771 = vpop.permute.xlu0 %770
        %772 = vrot.lane.b32.xlu0 %v282, 112
        %v773 = vpop.permute.xlu0 %772
        %774 = vrot.lane.b32.xlu0 %v283, 112
        %v775 = vpop.permute.xlu0 %774
        %776 = vrot.lane.b32.xlu0 %v284, 112
        %v777 = vpop.permute.xlu0 %776
        %v783 = vsel %vm310, %v766, 0
        %v786 = vsel %vm310, %v767, 0
        %v789 = vsel %vm310, %v768, 0
        %v792 = vsel %vm310, %v769, 0
        %794 = vmatpush.msra.mxu0 0.0
        %795 = vmatpush.msra.mxu0 0.0
        %796 = vmatpush.msra.mxu0 0.0
        %797 = vmatpush.msra.mxu0 0.0
        %798 = vmatpush.msra.mxu0 0.0
        %799 = vmatpush.msra.mxu0 0.0
        %800 = vmatpush.msra.mxu0 0.0
        %801 = vmatpush.msra.mxu0 0.0
        %802 = vmatpush.msra.mxu0 0.0
        %803 = vmatpush.msra.mxu0 0.0
        %804 = vmatpush.msra.mxu0 0.0
        %805 = vmatpush.msra.mxu0 0.0
        %806 = vmatpush.msra.mxu0 %v777
        %807 = vmatpush.msra.mxu0 %v775
        %808 = vmatpush.msra.mxu0 %v773
        %809 = vmatpush.msra.mxu0 %v771
        %810 = vmatmul.f32.gmra.mxu0 %v783
        %v811 = vpop.f32.mrf.mxu0
        %v812 = vadd.f32 0.0, %v811
        %813 = vmatmul.f32.gmra.mxu0 %v786
        %v814 = vpop.f32.mrf.mxu0
        %v815 = vadd.f32 0.0, %v814
        %816 = vmatmul.f32.gmra.mxu0 %v789
        %v817 = vpop.f32.mrf.mxu0
        %v818 = vadd.f32 0.0, %v817
        %819 = vmatmul.f32.gmra.mxu0 %v792
        %v820 = vpop.f32.mrf.mxu0
        %v821 = vadd.f32 0.0, %v820
        %822 = vdwg.mxu0
        %v823 = vadd.f32 %v761, %v812
        %v824 = vadd.f32 %v762, %v815
        %v825 = vadd.f32 %v763, %v818
        %v826 = vadd.f32 %v764, %v821
        %v827 = vsel %vm250, %v823, 0.0
        %v828 = vsel %vm250, %v824, 0.0
        %v829 = vadd.f32 %v827, %v828
        %v830 = vsel %vm250, %v825, 0.0
        %v831 = vadd.f32 %v829, %v830
        %v832 = vsel %vm250, %v826, 0.0
        %v833 = vadd.f32 %v831, %v832
        %v834 = vrot.slane %v833, 4
        %v835 = vadd.f32 %v833, %v834
        %v836 = vrot.slane %v835, 2
        %v837 = vadd.f32 %v835, %v836
        %v838 = vrot.slane %v837, 1
        %v839 = vadd.f32 %v837, %v838
        %v840 = vrcp.pop 32.0
        %v841 = vmul.f32 32.0, %v840
        %v842 = vsub.f32 1.0, %v841
        %v843 = vmul.f32 %v840, %v842
        %v844 = vadd.f32 %v840, %v843
        %vm845 = vweird.f32 %v840
        %v846 = vsel %vm845, %v840, %v844
        %v847 = vmul.f32 %v839, %v846
        %v848 = vsub.f32 %v823, %v847
        %v849 = vsub.f32 %v824, %v847
        %v850 = vsub.f32 %v825, %v847
        %v851 = vsub.f32 %v826, %v847
        %v852 = vmul.f32 %v848, %v848
        %v853 = vmul.f32 %v849, %v849
        %v854 = vmul.f32 %v850, %v850
        %v855 = vmul.f32 %v851, %v851
        %v856 = vsel %vm250, %v852, 0.0
        %v857 = vsel %vm250, %v853, 0.0
        %v858 = vadd.f32 %v856, %v857
        %v859 = vsel %vm250, %v854, 0.0
        %v860 = vadd.f32 %v858, %v859
        %v861 = vsel %vm250, %v855, 0.0
        %v862 = vadd.f32 %v860, %v861
        %v863 = vrot.slane %v862, 4
        %v864 = vadd.f32 %v862, %v863
        %v865 = vrot.slane %v864, 2
        %v866 = vadd.f32 %v864, %v865
        %v867 = vrot.slane %v866, 1
        %v868 = vadd.f32 %v866, %v867
        %v869 = vmul.f32 %v868, %v846
        %v870 = vadd.f32 %v869, 1e-05
        %v871 = vrsqrt.pop %v870
        %v872 = vmul.f32 %v871, %v870
        %v873 = vmul.f32 %v872, %v871
        %v874 = vmul.f32 0.5, %v873
        %v875 = vsub.f32 1.5, %v874
        %v876 = vmul.f32 %v871, %v875
        %vm877 = vweird.f32 %v870
        %vm878 = vweird.f32 %v871
        %vm879 = vmor %vm877, %vm878
        %v880 = vsel %vm879, %v871, %v876
        %v881 = vmul.f32 %v848, %v880
        %v882 = vmul.f32 %v849, %v880
        %v883 = vmul.f32 %v850, %v880
        %v884 = vmul.f32 %v851, %v880
        %v885 = vld [vmem:[%s2] sm:$0xff]
        %v886 = vld [vmem:[%s2 + $0x8] sm:$0xff]
        %v887 = vld [vmem:[%s2 + $0x10] sm:$0xff]
        %v888 = vld [vmem:[%s2 + $0x18] sm:$0xff]
        %890 = vset.pattern.permute.xlu0 0
        %891 = vperm.xlu0 %890, %v885
        %v892 = vpop.permute.xlu0 %891
        %895 = vset.pattern.permute.xlu0 0
        %896 = vperm.xlu0 %895, %v886
        %v897 = vpop.permute.xlu0 %896
        %900 = vset.pattern.permute.xlu0 0
        %901 = vperm.xlu0 %900, %v887
        %v902 = vpop.permute.xlu0 %901
        %905 = vset.pattern.permute.xlu0 0
        %906 = vperm.xlu0 %905, %v888
        %v907 = vpop.permute.xlu0 %906
        %v909 = vmul.f32 %v881, %v892
        %v910 = vmul.f32 %v882, %v897
        %v911 = vmul.f32 %v883, %v902
        %v912 = vmul.f32 %v884, %v907
        %v913 = vld [vmem:[%s3] sm:$0xff]
        %v914 = vld [vmem:[%s3 + $0x8] sm:$0xff]
        %v915 = vld [vmem:[%s3 + $0x10] sm:$0xff]
        %v916 = vld [vmem:[%s3 + $0x18] sm:$0xff]
        %918 = vset.pattern.permute.xlu0 0
        %919 = vperm.xlu0 %918, %v913
        %v920 = vpop.permute.xlu0 %919
        %923 = vset.pattern.permute.xlu0 0
        %924 = vperm.xlu0 %923, %v914
        %v925 = vpop.permute.xlu0 %924
        %928 = vset.pattern.permute.xlu0 0
        %929 = vperm.xlu0 %928, %v915
        %v930 = vpop.permute.xlu0 %929
        %933 = vset.pattern.permute.xlu0 0
        %934 = vperm.xlu0 %933, %v916
        %v935 = vpop.permute.xlu0 %934
        %v937 = vadd.f32 %v909, %v920
        %v938 = vadd.f32 %v910, %v925
        %v939 = vadd.f32 %v911, %v930
        %v940 = vadd.f32 %v912, %v935
        %v941 = vmul.f32 %v937, 0.5
        %v942 = vmul.f32 %v938, 0.5
        %v943 = vmul.f32 %v939, 0.5
        %v944 = vmul.f32 %v940, 0.5
        %v945 = vmul.f32 %v937, 0.70710677
        %v946 = vmul.f32 %v938, 0.70710677
        %v947 = vmul.f32 %v939, 0.70710677
        %v948 = vmul.f32 %v940, 0.70710677
        %v949 = vand.u32 2147483647, %v945
        %v950 = vand.u32 2147483647, %v946
        %v951 = vand.u32 2147483647, %v947
        %v952 = vand.u32 2147483647, %v948
        %v953 = vmul.f32 %v949, 0.3275911
        %v954 = vmul.f32 %v950, 0.3275911
        %v955 = vmul.f32 %v951, 0.3275911
        %v956 = vmul.f32 %v952, 0.3275911
        %v957 = vadd.f32 %v953, 1.0
        %v958 = vadd.f32 %v954, 1.0
        %v959 = vadd.f32 %v955, 1.0
        %v960 = vadd.f32 %v956, 1.0
        %v961 = vrcp.pop %v957
        %v962 = vrcp.pop %v958
        %v963 = vrcp.pop %v959
        %v964 = vrcp.pop %v960
        %v965 = vmul.f32 %v957, %v961
        %v966 = vmul.f32 %v958, %v962
        %v967 = vmul.f32 %v959, %v963
        %v968 = vmul.f32 %v960, %v964
        %v969 = vsub.f32 2.0, %v965
        %v970 = vsub.f32 2.0, %v966
        %v971 = vsub.f32 2.0, %v967
        %v972 = vsub.f32 2.0, %v968
        %v973 = vmul.f32 %v961, %v969
        %v974 = vmul.f32 %v962, %v970
        %v975 = vmul.f32 %v963, %v971
        %v976 = vmul.f32 %v964, %v972
        %v977 = vmul.f32 %v973, 1.0614054
        %v978 = vmul.f32 %v974, 1.0614054
        %v979 = vmul.f32 %v975, 1.0614054
        %v980 = vmul.f32 %v976, 1.0614054
        %v981 = vadd.f32 %v977, -1.4531521
        %v982 = vadd.f32 %v978, -1.4531521
        %v983 = vadd.f32 %v979, -1.4531521
        %v984 = vadd.f32 %v980, -1.4531521
        %v985 = vmul.f32 %v981, %v973
        %v986 = vmul.f32 %v982, %v974
        %v987 = vmul.f32 %v983, %v975
        %v988 = vmul.f32 %v984, %v976
        %v989 = vadd.f32 %v985, 1.4214138
        %v990 = vadd.f32 %v986, 1.4214138
        %v991 = vadd.f32 %v987, 1.4214138
        %v992 = vadd.f32 %v988, 1.4214138
        %v993 = vmul.f32 %v989, %v973
        %v994 = vmul.f32 %v990, %v974
        %v995 = vmul.f32 %v991, %v975
        %v996 = vmul.f32 %v992, %v976
        %v997 = vadd.f32 %v993, -0.28449672
        %v998 = vadd.f32 %v994, -0.28449672
        %v999 = vadd.f32 %v995, -0.28449672
        %v1000 = vadd.f32 %v996, -0.28449672
        %v1001 = vmul.f32 %v997, %v973
        %v1002 = vmul.f32 %v998, %v974
        %v1003 = vmul.f32 %v999, %v975
        %v1004 = vmul.f32 %v1000, %v976
        %v1005 = vadd.f32 %v1001, 0.2548296
        %v1006 = vadd.f32 %v1002, 0.2548296
        %v1007 = vadd.f32 %v1003, 0.2548296
        %v1008 = vadd.f32 %v1004, 0.2548296
        %v1009 = vmul.f32 %v1005, %v973
        %v1010 = vmul.f32 %v1006, %v974
        %v1011 = vmul.f32 %v1007, %v975
        %v1012 = vmul.f32 %v1008, %v976
        %v1013 = vsub.f32 0.0, %v949
        %v1014 = vsub.f32 0.0, %v950
        %v1015 = vsub.f32 0.0, %v951
        %v1016 = vsub.f32 0.0, %v952
        %v1017 = vmul.f32 %v1013, %v949
        %v1018 = vmul.f32 %v1014, %v950
        %v1019 = vmul.f32 %v1015, %v951
        %v1020 = vmul.f32 %v1016, %v952
        %v1021 = vmul.f32 %v1017, 1.442695
        %v1022 = vpow.pop %v1021
        %v1023 = vmul.f32 %v1018, 1.442695
        %v1024 = vpow.pop %v1023
        %v1025 = vmul.f32 %v1019, 1.442695
        %v1026 = vpow.pop %v1025
        %v1027 = vmul.f32 %v1020, 1.442695
        %v1028 = vpow.pop %v1027
        %v1029 = vmul.f32 %v1009, %v1022
        %v1030 = vmul.f32 %v1010, %v1024
        %v1031 = vmul.f32 %v1011, %v1026
        %v1032 = vmul.f32 %v1012, %v1028
        %v1033 = vsub.f32 1.0, %v1029
        %v1034 = vsub.f32 1.0, %v1030
        %v1035 = vsub.f32 1.0, %v1031
        %v1036 = vsub.f32 1.0, %v1032
        %vm1037 = vcmp.ge.f32.partialorder %v945, 0.0
        %vm1038 = vcmp.ge.f32.partialorder %v946, 0.0
        %vm1039 = vcmp.ge.f32.partialorder %v947, 0.0
        %vm1040 = vcmp.ge.f32.partialorder %v948, 0.0
        %v1041 = vsub.f32 0.0, %v1033
        %v1042 = vsub.f32 0.0, %v1034
        %v1043 = vsub.f32 0.0, %v1035
        %v1044 = vsub.f32 0.0, %v1036
        %v1045 = vsel %vm1037, %v1033, %v1041
        %v1046 = vsel %vm1038, %v1034, %v1042
        %v1047 = vsel %vm1039, %v1035, %v1043
        %v1048 = vsel %vm1040, %v1036, %v1044
        %v1049 = vadd.f32 %v1045, 1.0
        %v1050 = vadd.f32 %v1046, 1.0
        %v1051 = vadd.f32 %v1047, 1.0
        %v1052 = vadd.f32 %v1048, 1.0
        %v1053 = vmul.f32 %v941, %v1049
        %v1054 = vmul.f32 %v942, %v1050
        %v1055 = vmul.f32 %v943, %v1051
        %v1056 = vmul.f32 %v944, %v1052
        %1057 = vst.msk [vmem:[%s245] sm:$0xff] %vm250, %v1053
        %1058 = vst.msk [vmem:[%s245 + $0x8] sm:$0xff] %vm250, %v1054
        %1059 = vst.msk [vmem:[%s245 + $0x10] sm:$0xff] %vm250, %v1055
        %1060 = vst.msk [vmem:[%s245 + $0x18] sm:$0xff] %vm250, %v1056
        %p1061 = scmp.lt.s32.totalorder %s20, 1
        %s1062 = scalar_select %p1061, %s20, 1
        %p1063 = scmp.lt.s32.totalorder %s21, 0
        %s1064 = scalar_select %p1063, %s21, 0
        %s1065 = smul.addr %s1062, 4
        %s1066 = sadd.s32 %s1064, %s1065
        %s1067 = smul.addr %s1066, 8
        %s1068 = scalar_lea.vmem %s4, %s1067
        // Predicated region
        $region41: #{tpu_custom_call.1} parent=35 // pred_check
          %p1069 = pneg %p139
        $region42: #{tpu_custom_call.1} parent=35 // pred_check_branch
          %1071 = sbr.rel (%p1069) target = $region44
        $region43: #{tpu_custom_call.1} parent=35 // pred_region
          _
        $region44: #{tpu_custom_call.1} parent=35 // pred_fallthru
          _
      $region36: #{tpu_custom_call.1} parent=5 // pred_fallthru
        _
      %p1072 = scmp.le.s32.totalorder 2, %s11
      // Predicated region
      $region45: #{tpu_custom_call.1} parent=5 // pred_check
        %p1073 = pneg %p1072
      $region46: #{tpu_custom_call.1} parent=5 // pred_check_branch
        %1075 = sbr.rel (%p1073) target = $region48
      $region47: #{tpu_custom_call.1} parent=5 // pred_region
        %s1076 = ssub.s32 %s11, 2
        // Predicated region
        $region49: #{tpu_custom_call.1} parent=47 // pred_check
          %p1077 = pneg %p145
        $region50: #{tpu_custom_call.1} parent=47 // pred_check_branch
          %1079 = sbr.rel (%p1077) target = $region52
        $region51: #{tpu_custom_call.1} parent=47 // pred_region
          %p1080 = scmp.lt.s32.totalorder %s22, 1
          %s1081 = scalar_select %p1080, %s22, 1
          %p1082 = scmp.lt.s32.totalorder %s23, 0
          %s1083 = scalar_select %p1082, %s23, 0
          %s1084 = smul.addr %s1081, 4
          %s1085 = sadd.s32 %s1083, %s1084
          %s1086 = smul.addr %s1085, 8
          %s1087 = scalar_lea.vmem %s4, %s1086
        $region52: #{tpu_custom_call.1} parent=47 // pred_fallthru
          _
      $region48: #{tpu_custom_call.1} parent=5 // pred_fallthru
        _
    $region6: #{tpu_custom_call.1} parent=1 // loop_footer
      %s15 = sadd.s32 1, %s11
    $region7: #{tpu_custom_call.1} parent=1 // loop_footer_branch
      %10 = sbr.rel target = $region3
    $region8: #{tpu_custom_call.1} parent=1 // loop_exit
      _
    %1088 = vsyncpa [#allocation4], 1
    %s1089 = scalar_lea.sflag [#allocation4], 1
    %1090 = vsyncpa %s1089, 1

</llo_original>
